<compile_context>
chip_gen: v7x
topology: tpu7x:2x2x1
jax: 0.10.0
libtpu: 0.0.40
codegen_flags: <defaults>
</compile_context>

<pallas_src>
import math
from functools import partial

import numpy as np
import jax
import jax.numpy as jnp
from jax.experimental import pallas as pl
from jax.experimental.pallas import tpu as pltpu


def _fused_nmnet_kernel(xrep_ref, m2_ref, b1_ref, w2t_ref, b2_ref, o_ref):
    # fc1 for this W0-tile: (T, z*z) @ (z*z, z) -> (T, z), f32 accumulate.
    h = jnp.dot(m2_ref[...], xrep_ref[...], preferred_element_type=jnp.float32)
    h = jnp.maximum(h + b1_ref[...], 0.0)
    # fc2: (T, z) @ (z, W1) -> (T, W1); tall-M matmul on the MXU.
    y = jnp.dot(h, w2t_ref[...], preferred_element_type=jnp.float32)
    o_ref[...] = jnp.maximum(y + b2_ref[...], 0.0).astype(o_ref.dtype)


def _plan_w0_tiling(w0, z, w1, itemsize=4, stream_budget_bytes=24 * 1024 * 1024):
    """Pick a W0 tile so the double-buffered streaming blocks (M2 + b1 + out)
    fit comfortably inside the scoped VMEM budget on v5e/v6e/v7x."""
    per_row = itemsize * (z * z + z + w1)          # streamed bytes per W0 row
    cap = max(8, stream_budget_bytes // (2 * per_row))
    tile = min(w0, 512, cap)
    if tile >= w0:                                  # single block, no padding
        return w0, w0, 1
    tile = max(8, (tile // 8) * 8)                  # keep second-minor dim 8-aligned
    grid = -(-w0 // tile)
    return tile, tile * grid, grid


@partial(jax.jit,
         static_argnames=("z", "w0", "w1", "tile", "w0_pad", "grid", "out_shape"))
def _nmnet_forward(x, m2, b1r, w2t, b2r, *, z, w0, w1, tile, w0_pad, grid, out_shape):
    # Tiny block-diagonal expansion of the latent: Xrep[k*z + c', c] = x[k]*(c'==c).
    xrep = (x.astype(jnp.float32)[:, None, None]
            * jnp.eye(z, dtype=jnp.float32)).reshape(z * z, z)

    y = pl.pallas_call(
        _fused_nmnet_kernel,
        out_shape=jax.ShapeDtypeStruct((w0_pad, w1), jnp.float32),
        grid=(grid,),
        in_specs=[
            pl.BlockSpec((z * z, z), lambda i: (0, 0)),      # Xrep, VMEM-resident
            pl.BlockSpec((tile, z * z), lambda i: (i, 0)),   # M2, streamed (lane-dense)
            pl.BlockSpec((tile, z), lambda i: (i, 0)),       # fc1 bias (reshaped), streamed
            pl.BlockSpec((z, w1), lambda i: (0, 0)),         # fc2_w.T, resident
            pl.BlockSpec((1, w1), lambda i: (0, 0)),         # fc2 bias, resident
        ],
        out_specs=pl.BlockSpec((tile, w1), lambda i: (i, 0)),
        compiler_params=pltpu.CompilerParams(
            dimension_semantics=("parallel",),               # shards over v7x's 2 TCs
            vmem_limit_bytes=48 * 1024 * 1024,               # safe on 64 MiB v7x VMEM
        ),
    )(xrep, m2, b1r, w2t, b2r)

    return y[:w0].reshape(out_shape)


class NMNetPallas:
    """JAX/Pallas mirror of the PyTorch NMNet module (deterministic params)."""

    def __init__(self, weight_shape, z_dim, key):
        self.original_shape = np.array(weight_shape)
        if len(self.original_shape) == 1:
            self.weight_shape = np.concatenate(
                [np.ones(1, dtype=np.int64), self.original_shape])
        else:
            self.weight_shape = self.original_shape[::-1]
        self.z_dim = int(z_dim)

        z = self.z_dim
        w0 = int(self.weight_shape[0])
        w1 = int(self.weight_shape[1])
        self.w0, self.w1 = w0, w1

        k1, k2, k3, k4 = jax.random.split(key, 4)
        bound = 1.0 / math.sqrt(z)
        # Same parameterization as nn.Linear (weight: (out, in), bias: (out,)).
        self.fc1_w = jax.random.uniform(k1, (z * w0, z), jnp.float32, -bound, bound)
        self.fc1_b = jax.random.uniform(k2, (z * w0,), jnp.float32, -bound, bound)
        self.fc2_w = jax.random.uniform(k3, (w1, z), jnp.float32, -bound, bound)
        self.fc2_b = jax.random.uniform(k4, (w1,), jnp.float32, -bound, bound)

        # --- one-time kernel-friendly re-layouts (no per-call transposes) ---
        self.tile, self.w0_pad, self.grid = _plan_w0_tiling(w0, z, w1)

        # M2[r, k*z + c] = fc1_w[r*z + c, k]
        m2 = jnp.transpose(self.fc1_w.reshape(w0, z, z), (0, 2, 1)).reshape(w0, z * z)
        b1r = self.fc1_b.reshape(w0, z)
        if self.w0_pad != w0:
            m2 = jnp.pad(m2, ((0, self.w0_pad - w0), (0, 0)))
            b1r = jnp.pad(b1r, ((0, self.w0_pad - w0), (0, 0)))
        self.m2 = m2                       # (w0_pad, z*z)  streamed
        self.b1r = b1r                     # (w0_pad, z)    streamed
        self.w2t = self.fc2_w.T            # (z, w1)        resident
        self.b2r = self.fc2_b.reshape(1, w1)

        # NOTE: weights kept in f32 so the rtol=1e-5 validation below holds;
        # for a memory-bound production path, cast m2/w2t (and the output) to
        # bf16 and loosen tolerances for ~2x bandwidth savings.

    def __call__(self, x):
        return _nmnet_forward(
            x, self.m2, self.b1r, self.w2t, self.b2r,
            z=self.z_dim, w0=self.w0, w1=self.w1,
            tile=self.tile, w0_pad=self.w0_pad, grid=self.grid,
            out_shape=tuple(int(d) for d in self.original_shape))

    # Pure-JAX reference for correctness checking (uses the original layouts).
    def reference(self, x):
        z = self.z_dim
        h = jnp.maximum(x @ self.fc1_w.T + self.fc1_b, 0.0)
        h = h.reshape(self.w0, z)
        y = jnp.maximum(h @ self.fc2_w.T + self.fc2_b, 0.0)
        return y.reshape(*[int(d) for d in self.original_shape])


if __name__ == "__main__":
    # Small shapes consistent with the module: generate a (16, 8) weight tensor
    # from a z_dim=32 latent.
    weight_shape = (16, 8)
    z_dim = 32

    key = jax.random.PRNGKey(0)
    k_param, k_x = jax.random.split(key)

    net = NMNetPallas(weight_shape, z_dim, k_param)
    x = jax.random.normal(k_x, (z_dim,), dtype=jnp.float32)

    out = jax.block_until_ready(net(x))
    ref = net.reference(x)

    assert out.shape == tuple(weight_shape), out.shape
    np.testing.assert_allclose(np.asarray(out), np.asarray(ref), rtol=1e-5, atol=1e-5)

    print("KERNEL_OK")
</pallas_src>

<mosaic_0001>
module attributes {stable_mosaic.version = 11 : i64} {
  func.func @_fused_nmnet_kernel(%arg0: i32, %arg1: memref<1024x32xf32, #tpu.memory_space<vmem>>, %arg2: memref<8x1024xf32, #tpu.memory_space<vmem>>, %arg3: memref<8x32xf32, #tpu.memory_space<vmem>>, %arg4: memref<32x16xf32, #tpu.memory_space<vmem>>, %arg5: memref<1x16xf32, #tpu.memory_space<vmem>>, %arg6: memref<8x16xf32, #tpu.memory_space<vmem>>) attributes {dimension_semantics = [#tpu.dimension_semantics<parallel>], iteration_bounds = array<i64: 1>, scalar_prefetch = 0 : i64, scratch_operands = 0 : i64, tpu.core_type = #tpu.core_type<tc>, window_params = [{pipeline_mode = #tpu.pipeline_mode<synchronous>, transform_indices = @transform_0, window_bounds = array<i64: 1024, 32>}, {transform_indices = @transform_1, window_bounds = array<i64: 8, 1024>}, {transform_indices = @transform_2, window_bounds = array<i64: 8, 32>}, {pipeline_mode = #tpu.pipeline_mode<synchronous>, transform_indices = @transform_3, window_bounds = array<i64: 32, 16>}, {pipeline_mode = #tpu.pipeline_mode<synchronous>, transform_indices = @transform_4, window_bounds = array<i64: 1, 16>}, {transform_indices = @transform_5, window_bounds = array<i64: 8, 16>}]} {
    %c0 = arith.constant 0 : index
    %c0_0 = arith.constant 0 : index
    %0 = vector.load %arg2[%c0, %c0_0] : memref<8x1024xf32, #tpu.memory_space<vmem>>, vector<8x1024xf32>
    %c0_1 = arith.constant 0 : index
    %c0_2 = arith.constant 0 : index
    %1 = vector.load %arg1[%c0_1, %c0_2] : memref<1024x32xf32, #tpu.memory_space<vmem>>, vector<1024x32xf32>
    %cst = arith.constant dense<0.000000e+00> : vector<8x32xf32>
    %2 = tpu.matmul %0, %1, %cst {dimension_numbers = #tpu.dot_dimension_numbers<[1], [0], [0], [1], [0, 0, 1, 1], [], []>} : vector<8x1024xf32>, vector<1024x32xf32>, vector<8x32xf32> -> vector<8x32xf32>
    %c0_3 = arith.constant 0 : index
    %c0_4 = arith.constant 0 : index
    %3 = vector.load %arg3[%c0_3, %c0_4] : memref<8x32xf32, #tpu.memory_space<vmem>>, vector<8x32xf32>
    %4 = arith.addf %2, %3 : vector<8x32xf32>
    %cst_5 = arith.constant 0.000000e+00 : f32
    %5 = vector.broadcast %cst_5 : f32 to vector<8x32xf32>
    %6 = arith.maximumf %4, %5 : vector<8x32xf32>
    %c0_6 = arith.constant 0 : index
    %c0_7 = arith.constant 0 : index
    %7 = vector.load %arg4[%c0_6, %c0_7] : memref<32x16xf32, #tpu.memory_space<vmem>>, vector<32x16xf32>
    %cst_8 = arith.constant dense<0.000000e+00> : vector<8x16xf32>
    %8 = tpu.matmul %6, %7, %cst_8 {dimension_numbers = #tpu.dot_dimension_numbers<[1], [0], [0], [1], [0, 0, 1, 1], [], []>} : vector<8x32xf32>, vector<32x16xf32>, vector<8x16xf32> -> vector<8x16xf32>
    %c0_9 = arith.constant 0 : index
    %c0_10 = arith.constant 0 : index
    %9 = vector.load %arg5[%c0_9, %c0_10] : memref<1x16xf32, #tpu.memory_space<vmem>>, vector<1x16xf32>
    %10 = vector.broadcast %9 : vector<1x16xf32> to vector<8x16xf32>
    %11 = arith.addf %8, %10 : vector<8x16xf32>
    %cst_11 = arith.constant 0.000000e+00 : f32
    %12 = vector.broadcast %cst_11 : f32 to vector<8x16xf32>
    %13 = arith.maximumf %11, %12 : vector<8x16xf32>
    %c0_12 = arith.constant 0 : index
    %c0_13 = arith.constant 0 : index
    %14 = vector.load %arg6[%c0_12, %c0_13] : memref<8x16xf32, #tpu.memory_space<vmem>>, vector<8x16xf32>
    tpu.vector_store %arg6[%c0_12, %c0_13], %13 {strides = array<i32>} : memref<8x16xf32, #tpu.memory_space<vmem>>, vector<8x16xf32>,
    return
  }
  func.func @transform_0(%arg0: i32) -> (i32, i32) {
    %c0_i32 = arith.constant 0 : i32
    %c0_i32_0 = arith.constant 0 : i32
    %c0_i32_1 = arith.constant 0 : i32
    return %c0_i32, %c0_i32_0 : i32, i32
  }
  func.func @transform_1(%arg0: i32) -> (i32, i32) {
    %c0_i32 = arith.constant 0 : i32
    %c0_i32_0 = arith.constant 0 : i32
    return %arg0, %c0_i32 : i32, i32
  }
  func.func @transform_2(%arg0: i32) -> (i32, i32) {
    %c0_i32 = arith.constant 0 : i32
    %c0_i32_0 = arith.constant 0 : i32
    return %arg0, %c0_i32 : i32, i32
  }
  func.func @transform_3(%arg0: i32) -> (i32, i32) {
    %c0_i32 = arith.constant 0 : i32
    %c0_i32_0 = arith.constant 0 : i32
    %c0_i32_1 = arith.constant 0 : i32
    return %c0_i32, %c0_i32_0 : i32, i32
  }
  func.func @transform_4(%arg0: i32) -> (i32, i32) {
    %c0_i32 = arith.constant 0 : i32
    %c0_i32_0 = arith.constant 0 : i32
    %c0_i32_1 = arith.constant 0 : i32
    return %c0_i32, %c0_i32_0 : i32, i32
  }
  func.func @transform_5(%arg0: i32) -> (i32, i32) {
    %c0_i32 = arith.constant 0 : i32
    %c0_i32_0 = arith.constant 0 : i32
    return %arg0, %c0_i32 : i32, i32
  }
}

</mosaic_0001>

<llo_original>
// kernel: _nmnet_forward.1
$region0: #{_nmnet_forward.1}
  #allocation0 [shape = 'u32[]', space=smem, size = 0x4, offset = 0x4, fixed_abs, tag = 'smem constant byte address 0x4 - core index']
  #allocation1 [shape = 'u32[144,128]{1,0:T(1,128)}', space=vmem, size = 0x12000, scoped, tag = 'internal scratch']
  %s0 = inlined_call_operand.vmem [shape: f32[1024,32], index: 0, kind: input, shape index: {}]
  %s1 = inlined_call_operand.vmem [shape: f32[8,1024], index: 1, kind: input, shape index: {}]
  %s2 = inlined_call_operand.vmem [shape: f32[8,32], index: 2, kind: input, shape index: {}]
  %s3 = inlined_call_operand.vmem [shape: f32[32,16], index: 3, kind: input, shape index: {}]
  %s4 = inlined_call_operand.vmem [shape: f32[1,16], index: 4, kind: input, shape index: {}]
  %s5 = inlined_call_operand.vmem [shape: f32[8,16], index: 5, kind: output, shape index: {}]
  %s6 = sld [smem:[#allocation0]]
  $region30: #{_nmnet_forward.1} parent=0
    _
  %s8 = ssub.s32 1, %s6
  %s9 = scalar_select 0, %s8, %s6
  // Predicated region
  $region2: #{_nmnet_forward.1} parent=0 // pred_check
    _
  $region3: #{_nmnet_forward.1} parent=0 // pred_check_branch
    %11 = sbr.rel (0) target = $region5
  $region4: #{_nmnet_forward.1} parent=0 // pred_region
    _
  $region5: #{_nmnet_forward.1} parent=0 // pred_fallthru
    _
  // Predicated region
  $region6: #{_nmnet_forward.1} parent=0 // pred_check
    _
  $region7: #{_nmnet_forward.1} parent=0 // pred_check_branch
    %13 = sbr.rel (0) target = $region9
  $region8: #{_nmnet_forward.1} parent=0 // pred_region
    _
  $region9: #{_nmnet_forward.1} parent=0 // pred_fallthru
    _
  // Predicated region
  $region10: #{_nmnet_forward.1} parent=0 // pred_check
    _
  $region11: #{_nmnet_forward.1} parent=0 // pred_check_branch
    %15 = sbr.rel (0) target = $region13
  $region12: #{_nmnet_forward.1} parent=0 // pred_region
    _
  $region13: #{_nmnet_forward.1} parent=0 // pred_fallthru
    _
  // Predicated region
  $region14: #{_nmnet_forward.1} parent=0 // pred_check
    _
  $region15: #{_nmnet_forward.1} parent=0 // pred_check_branch
    %17 = sbr.rel (0) target = $region17
  $region16: #{_nmnet_forward.1} parent=0 // pred_region
    _
  $region17: #{_nmnet_forward.1} parent=0 // pred_fallthru
    _
  // Predicated region
  $region18: #{_nmnet_forward.1} parent=0 // pred_check
    _
  $region19: #{_nmnet_forward.1} parent=0 // pred_check_branch
    %19 = sbr.rel (0) target = $region21
  $region20: #{_nmnet_forward.1} parent=0 // pred_region
    _
  $region21: #{_nmnet_forward.1} parent=0 // pred_fallthru
    _
  %v20 = vld [vmem:[%s1] sm:$0xff]
  %v21 = vld [vmem:[%s1 + $0x8] sm:$0xff]
  %v22 = vld [vmem:[%s1 + $0x10] sm:$0xff]
  %v23 = vld [vmem:[%s1 + $0x18] sm:$0xff]
  %v24 = vld [vmem:[%s1 + $0x20] sm:$0xff]
  %v25 = vld [vmem:[%s1 + $0x28] sm:$0xff]
  %v26 = vld [vmem:[%s1 + $0x30] sm:$0xff]
  %v27 = vld [vmem:[%s1 + $0x38] sm:$0xff]
  %v28 = vld [vmem:[%s0] sm:$0xff]
  %v29 = vld [vmem:[%s0 + $0x8] sm:$0xff]
  %v30 = vld [vmem:[%s0 + $0x10] sm:$0xff]
  %v31 = vld [vmem:[%s0 + $0x18] sm:$0xff]
  %v32 = vld [vmem:[%s0 + $0x20] sm:$0xff]
  %v33 = vld [vmem:[%s0 + $0x28] sm:$0xff]
  %v34 = vld [vmem:[%s0 + $0x30] sm:$0xff]
  %v35 = vld [vmem:[%s0 + $0x38] sm:$0xff]
  %v36 = vld [vmem:[%s0 + $0x40] sm:$0xff]
  %v37 = vld [vmem:[%s0 + $0x48] sm:$0xff]
  %v38 = vld [vmem:[%s0 + $0x50] sm:$0xff]
  %v39 = vld [vmem:[%s0 + $0x58] sm:$0xff]
  %v40 = vld [vmem:[%s0 + $0x60] sm:$0xff]
  %v41 = vld [vmem:[%s0 + $0x68] sm:$0xff]
  %v42 = vld [vmem:[%s0 + $0x70] sm:$0xff]
  %v43 = vld [vmem:[%s0 + $0x78] sm:$0xff]
  %v44 = vld [vmem:[%s0 + $0x80] sm:$0xff]
  %v45 = vld [vmem:[%s0 + $0x88] sm:$0xff]
  %v46 = vld [vmem:[%s0 + $0x90] sm:$0xff]
  %v47 = vld [vmem:[%s0 + $0x98] sm:$0xff]
  %v48 = vld [vmem:[%s0 + $0xa0] sm:$0xff]
  %v49 = vld [vmem:[%s0 + $0xa8] sm:$0xff]
  %v50 = vld [vmem:[%s0 + $0xb0] sm:$0xff]
  %v51 = vld [vmem:[%s0 + $0xb8] sm:$0xff]
  %v52 = vld [vmem:[%s0 + $0xc0] sm:$0xff]
  %v53 = vld [vmem:[%s0 + $0xc8] sm:$0xff]
  %v54 = vld [vmem:[%s0 + $0xd0] sm:$0xff]
  %v55 = vld [vmem:[%s0 + $0xd8] sm:$0xff]
  %v56 = vld [vmem:[%s0 + $0xe0] sm:$0xff]
  %v57 = vld [vmem:[%s0 + $0xe8] sm:$0xff]
  %v58 = vld [vmem:[%s0 + $0xf0] sm:$0xff]
  %v59 = vld [vmem:[%s0 + $0xf8] sm:$0xff]
  %v60 = vld [vmem:[%s0 + $0x100] sm:$0xff]
  %v61 = vld [vmem:[%s0 + $0x108] sm:$0xff]
  %v62 = vld [vmem:[%s0 + $0x110] sm:$0xff]
  %v63 = vld [vmem:[%s0 + $0x118] sm:$0xff]
  %v64 = vld [vmem:[%s0 + $0x120] sm:$0xff]
  %v65 = vld [vmem:[%s0 + $0x128] sm:$0xff]
  %v66 = vld [vmem:[%s0 + $0x130] sm:$0xff]
  %v67 = vld [vmem:[%s0 + $0x138] sm:$0xff]
  %v68 = vld [vmem:[%s0 + $0x140] sm:$0xff]
  %v69 = vld [vmem:[%s0 + $0x148] sm:$0xff]
  %v70 = vld [vmem:[%s0 + $0x150] sm:$0xff]
  %v71 = vld [vmem:[%s0 + $0x158] sm:$0xff]
  %v72 = vld [vmem:[%s0 + $0x160] sm:$0xff]
  %v73 = vld [vmem:[%s0 + $0x168] sm:$0xff]
  %v74 = vld [vmem:[%s0 + $0x170] sm:$0xff]
  %v75 = vld [vmem:[%s0 + $0x178] sm:$0xff]
  %v76 = vld [vmem:[%s0 + $0x180] sm:$0xff]
  %v77 = vld [vmem:[%s0 + $0x188] sm:$0xff]
  %v78 = vld [vmem:[%s0 + $0x190] sm:$0xff]
  %v79 = vld [vmem:[%s0 + $0x198] sm:$0xff]
  %v80 = vld [vmem:[%s0 + $0x1a0] sm:$0xff]
  %v81 = vld [vmem:[%s0 + $0x1a8] sm:$0xff]
  %v82 = vld [vmem:[%s0 + $0x1b0] sm:$0xff]
  %v83 = vld [vmem:[%s0 + $0x1b8] sm:$0xff]
  %v84 = vld [vmem:[%s0 + $0x1c0] sm:$0xff]
  %v85 = vld [vmem:[%s0 + $0x1c8] sm:$0xff]
  %v86 = vld [vmem:[%s0 + $0x1d0] sm:$0xff]
  %v87 = vld [vmem:[%s0 + $0x1d8] sm:$0xff]
  %v88 = vld [vmem:[%s0 + $0x1e0] sm:$0xff]
  %v89 = vld [vmem:[%s0 + $0x1e8] sm:$0xff]
  %v90 = vld [vmem:[%s0 + $0x1f0] sm:$0xff]
  %v91 = vld [vmem:[%s0 + $0x1f8] sm:$0xff]
  %v92 = vld [vmem:[%s0 + $0x200] sm:$0xff]
  %v93 = vld [vmem:[%s0 + $0x208] sm:$0xff]
  %v94 = vld [vmem:[%s0 + $0x210] sm:$0xff]
  %v95 = vld [vmem:[%s0 + $0x218] sm:$0xff]
  %v96 = vld [vmem:[%s0 + $0x220] sm:$0xff]
  %v97 = vld [vmem:[%s0 + $0x228] sm:$0xff]
  %v98 = vld [vmem:[%s0 + $0x230] sm:$0xff]
  %v99 = vld [vmem:[%s0 + $0x238] sm:$0xff]
  %v100 = vld [vmem:[%s0 + $0x240] sm:$0xff]
  %v101 = vld [vmem:[%s0 + $0x248] sm:$0xff]
  %v102 = vld [vmem:[%s0 + $0x250] sm:$0xff]
  %v103 = vld [vmem:[%s0 + $0x258] sm:$0xff]
  %v104 = vld [vmem:[%s0 + $0x260] sm:$0xff]
  %v105 = vld [vmem:[%s0 + $0x268] sm:$0xff]
  %v106 = vld [vmem:[%s0 + $0x270] sm:$0xff]
  %v107 = vld [vmem:[%s0 + $0x278] sm:$0xff]
  %v108 = vld [vmem:[%s0 + $0x280] sm:$0xff]
  %v109 = vld [vmem:[%s0 + $0x288] sm:$0xff]
  %v110 = vld [vmem:[%s0 + $0x290] sm:$0xff]
  %v111 = vld [vmem:[%s0 + $0x298] sm:$0xff]
  %v112 = vld [vmem:[%s0 + $0x2a0] sm:$0xff]
  %v113 = vld [vmem:[%s0 + $0x2a8] sm:$0xff]
  %v114 = vld [vmem:[%s0 + $0x2b0] sm:$0xff]
  %v115 = vld [vmem:[%s0 + $0x2b8] sm:$0xff]
  %v116 = vld [vmem:[%s0 + $0x2c0] sm:$0xff]
  %v117 = vld [vmem:[%s0 + $0x2c8] sm:$0xff]
  %v118 = vld [vmem:[%s0 + $0x2d0] sm:$0xff]
  %v119 = vld [vmem:[%s0 + $0x2d8] sm:$0xff]
  %v120 = vld [vmem:[%s0 + $0x2e0] sm:$0xff]
  %v121 = vld [vmem:[%s0 + $0x2e8] sm:$0xff]
  %v122 = vld [vmem:[%s0 + $0x2f0] sm:$0xff]
  %v123 = vld [vmem:[%s0 + $0x2f8] sm:$0xff]
  %v124 = vld [vmem:[%s0 + $0x300] sm:$0xff]
  %v125 = vld [vmem:[%s0 + $0x308] sm:$0xff]
  %v126 = vld [vmem:[%s0 + $0x310] sm:$0xff]
  %v127 = vld [vmem:[%s0 + $0x318] sm:$0xff]
  %v128 = vld [vmem:[%s0 + $0x320] sm:$0xff]
  %v129 = vld [vmem:[%s0 + $0x328] sm:$0xff]
  %v130 = vld [vmem:[%s0 + $0x330] sm:$0xff]
  %v131 = vld [vmem:[%s0 + $0x338] sm:$0xff]
  %v132 = vld [vmem:[%s0 + $0x340] sm:$0xff]
  %v133 = vld [vmem:[%s0 + $0x348] sm:$0xff]
  %v134 = vld [vmem:[%s0 + $0x350] sm:$0xff]
  %v135 = vld [vmem:[%s0 + $0x358] sm:$0xff]
  %v136 = vld [vmem:[%s0 + $0x360] sm:$0xff]
  %v137 = vld [vmem:[%s0 + $0x368] sm:$0xff]
  %v138 = vld [vmem:[%s0 + $0x370] sm:$0xff]
  %v139 = vld [vmem:[%s0 + $0x378] sm:$0xff]
  %v140 = vld [vmem:[%s0 + $0x380] sm:$0xff]
  %v141 = vld [vmem:[%s0 + $0x388] sm:$0xff]
  %v142 = vld [vmem:[%s0 + $0x390] sm:$0xff]
  %v143 = vld [vmem:[%s0 + $0x398] sm:$0xff]
  %v144 = vld [vmem:[%s0 + $0x3a0] sm:$0xff]
  %v145 = vld [vmem:[%s0 + $0x3a8] sm:$0xff]
  %v146 = vld [vmem:[%s0 + $0x3b0] sm:$0xff]
  %v147 = vld [vmem:[%s0 + $0x3b8] sm:$0xff]
  %v148 = vld [vmem:[%s0 + $0x3c0] sm:$0xff]
  %v149 = vld [vmem:[%s0 + $0x3c8] sm:$0xff]
  %v150 = vld [vmem:[%s0 + $0x3d0] sm:$0xff]
  %v151 = vld [vmem:[%s0 + $0x3d8] sm:$0xff]
  %v152 = vld [vmem:[%s0 + $0x3e0] sm:$0xff]
  %v153 = vld [vmem:[%s0 + $0x3e8] sm:$0xff]
  %v154 = vld [vmem:[%s0 + $0x3f0] sm:$0xff]
  %v155 = vld [vmem:[%s0 + $0x3f8] sm:$0xff]
  %v156 = vld [vmem:[%s2] sm:$0xff]
  %157 = vmatprep.subr.mxu0 0.0
  %158 = vmatpush1.msra.mxu0 %v28
  %159 = vmatprep.subr.mxu0 0.0
  %160 = vmatpush1.msra.mxu0 %v29
  %161 = vmatprep.subr.mxu0 0.0
  %162 = vmatpush1.msra.mxu0 %v30
  %163 = vmatprep.subr.mxu0 0.0
  %164 = vmatpush1.msra.mxu0 %v31
  %165 = vmatprep.subr.mxu0 0.0
  %166 = vmatpush1.msra.mxu0 %v32
  %167 = vmatprep.subr.mxu0 0.0
  %168 = vmatpush1.msra.mxu0 %v33
  %169 = vmatprep.subr.mxu0 0.0
  %170 = vmatpush1.msra.mxu0 %v34
  %171 = vmatprep.subr.mxu0 0.0
  %172 = vmatpush1.msra.mxu0 %v35
  %173 = vmatprep.subr.mxu0 0.0
  %174 = vmatpush1.msra.mxu0 %v36
  %175 = vmatprep.subr.mxu0 0.0
  %176 = vmatpush1.msra.mxu0 %v37
  %177 = vmatprep.subr.mxu0 0.0
  %178 = vmatpush1.msra.mxu0 %v38
  %179 = vmatprep.subr.mxu0 0.0
  %180 = vmatpush1.msra.mxu0 %v39
  %181 = vmatprep.subr.mxu0 0.0
  %182 = vmatpush1.msra.mxu0 %v40
  %183 = vmatprep.subr.mxu0 0.0
  %184 = vmatpush1.msra.mxu0 %v41
  %185 = vmatprep.subr.mxu0 0.0
  %186 = vmatpush1.msra.mxu0 %v42
  %187 = vmatprep.subr.mxu0 0.0
  %188 = vmatpush1.msra.mxu0 %v43
  %189 = vmatprep.subr.mxu0 0.0
  %190 = vmatpush1.msra.mxu0 %v44
  %191 = vmatprep.subr.mxu0 0.0
  %192 = vmatpush1.msra.mxu0 %v45
  %193 = vmatprep.subr.mxu0 0.0
  %194 = vmatpush1.msra.mxu0 %v46
  %195 = vmatprep.subr.mxu0 0.0
  %196 = vmatpush1.msra.mxu0 %v47
  %197 = vmatprep.subr.mxu0 0.0
  %198 = vmatpush1.msra.mxu0 %v48
  %199 = vmatprep.subr.mxu0 0.0
  %200 = vmatpush1.msra.mxu0 %v49
  %201 = vmatprep.subr.mxu0 0.0
  %202 = vmatpush1.msra.mxu0 %v50
  %203 = vmatprep.subr.mxu0 0.0
  %204 = vmatpush1.msra.mxu0 %v51
  %205 = vmatprep.subr.mxu0 0.0
  %206 = vmatpush1.msra.mxu0 %v52
  %207 = vmatprep.subr.mxu0 0.0
  %208 = vmatpush1.msra.mxu0 %v53
  %209 = vmatprep.subr.mxu0 0.0
  %210 = vmatpush1.msra.mxu0 %v54
  %211 = vmatprep.subr.mxu0 0.0
  %212 = vmatpush1.msra.mxu0 %v55
  %213 = vmatprep.subr.mxu0 0.0
  %214 = vmatpush1.msra.mxu0 %v56
  %215 = vmatprep.subr.mxu0 0.0
  %216 = vmatpush1.msra.mxu0 %v57
  %217 = vmatprep.subr.mxu0 0.0
  %218 = vmatpush1.msra.mxu0 %v58
  %219 = vmatprep.subr.mxu0 0.0
  %220 = vmatpush1.msra.mxu0 %v59
  %221 = vmatprep.mubr.f32.mxu0 %v21
  %222 = vmatmul.mubr.f32.gmra.mrb[0].mxu0 %v20
  %v223 = vpop.f32.mrb[0].mxu0
  %v224 = vadd.f32 %v156, %v223
  %v225 = vpop.f32.mrb[0].mxu0
  %226 = vdwg.mxu0
  %227 = vmatprep.subr.mxu0 0.0
  %228 = vmatpush1.msra.mxu0 %v60
  %229 = vmatprep.subr.mxu0 0.0
  %230 = vmatpush1.msra.mxu0 %v61
  %231 = vmatprep.subr.mxu0 0.0
  %232 = vmatpush1.msra.mxu0 %v62
  %233 = vmatprep.subr.mxu0 0.0
  %234 = vmatpush1.msra.mxu0 %v63
  %235 = vmatprep.subr.mxu0 0.0
  %236 = vmatpush1.msra.mxu0 %v64
  %237 = vmatprep.subr.mxu0 0.0
  %238 = vmatpush1.msra.mxu0 %v65
  %239 = vmatprep.subr.mxu0 0.0
  %240 = vmatpush1.msra.mxu0 %v66
  %241 = vmatprep.subr.mxu0 0.0
  %242 = vmatpush1.msra.mxu0 %v67
  %243 = vmatprep.subr.mxu0 0.0
  %244 = vmatpush1.msra.mxu0 %v68
  %245 = vmatprep.subr.mxu0 0.0
  %246 = vmatpush1.msra.mxu0 %v69
  %247 = vmatprep.subr.mxu0 0.0
  %248 = vmatpush1.msra.mxu0 %v70
  %249 = vmatprep.subr.mxu0 0.0
  %250 = vmatpush1.msra.mxu0 %v71
  %251 = vmatprep.subr.mxu0 0.0
  %252 = vmatpush1.msra.mxu0 %v72
  %253 = vmatprep.subr.mxu0 0.0
  %254 = vmatpush1.msra.mxu0 %v73
  %255 = vmatprep.subr.mxu0 0.0
  %256 = vmatpush1.msra.mxu0 %v74
  %257 = vmatprep.subr.mxu0 0.0
  %258 = vmatpush1.msra.mxu0 %v75
  %259 = vmatprep.subr.mxu0 0.0
  %260 = vmatpush1.msra.mxu0 %v76
  %261 = vmatprep.subr.mxu0 0.0
  %262 = vmatpush1.msra.mxu0 %v77
  %263 = vmatprep.subr.mxu0 0.0
  %264 = vmatpush1.msra.mxu0 %v78
  %265 = vmatprep.subr.mxu0 0.0
  %266 = vmatpush1.msra.mxu0 %v79
  %267 = vmatprep.subr.mxu0 0.0
  %268 = vmatpush1.msra.mxu0 %v80
  %269 = vmatprep.subr.mxu0 0.0
  %270 = vmatpush1.msra.mxu0 %v81
  %271 = vmatprep.subr.mxu0 0.0
  %272 = vmatpush1.msra.mxu0 %v82
  %273 = vmatprep.subr.mxu0 0.0
  %274 = vmatpush1.msra.mxu0 %v83
  %275 = vmatprep.subr.mxu0 0.0
  %276 = vmatpush1.msra.mxu0 %v84
  %277 = vmatprep.subr.mxu0 0.0
  %278 = vmatpush1.msra.mxu0 %v85
  %279 = vmatprep.subr.mxu0 0.0
  %280 = vmatpush1.msra.mxu0 %v86
  %281 = vmatprep.subr.mxu0 0.0
  %282 = vmatpush1.msra.mxu0 %v87
  %283 = vmatprep.subr.mxu0 0.0
  %284 = vmatpush1.msra.mxu0 %v88
  %285 = vmatprep.subr.mxu0 0.0
  %286 = vmatpush1.msra.mxu0 %v89
  %287 = vmatprep.subr.mxu0 0.0
  %288 = vmatpush1.msra.mxu0 %v90
  %289 = vmatprep.subr.mxu0 0.0
  %290 = vmatpush1.msra.mxu0 %v91
  %291 = vmatprep.mubr.f32.mxu0 %v23
  %292 = vmatmul.mubr.f32.gmra.mrb[0].mxu0 %v22
  %v293 = vpop.f32.mrb[0].mxu0
  %v294 = vadd.f32 %v224, %v293
  %v295 = vpop.f32.mrb[0].mxu0
  %296 = vdwg.mxu0
  %297 = vmatprep.subr.mxu0 0.0
  %298 = vmatpush1.msra.mxu0 %v92
  %299 = vmatprep.subr.mxu0 0.0
  %300 = vmatpush1.msra.mxu0 %v93
  %301 = vmatprep.subr.mxu0 0.0
  %302 = vmatpush1.msra.mxu0 %v94
  %303 = vmatprep.subr.mxu0 0.0
  %304 = vmatpush1.msra.mxu0 %v95
  %305 = vmatprep.subr.mxu0 0.0
  %306 = vmatpush1.msra.mxu0 %v96
  %307 = vmatprep.subr.mxu0 0.0
  %308 = vmatpush1.msra.mxu0 %v97
  %309 = vmatprep.subr.mxu0 0.0
  %310 = vmatpush1.msra.mxu0 %v98
  %311 = vmatprep.subr.mxu0 0.0
  %312 = vmatpush1.msra.mxu0 %v99
  %313 = vmatprep.subr.mxu0 0.0
  %314 = vmatpush1.msra.mxu0 %v100
  %315 = vmatprep.subr.mxu0 0.0
  %316 = vmatpush1.msra.mxu0 %v101
  %317 = vmatprep.subr.mxu0 0.0
  %318 = vmatpush1.msra.mxu0 %v102
  %319 = vmatprep.subr.mxu0 0.0
  %320 = vmatpush1.msra.mxu0 %v103
  %321 = vmatprep.subr.mxu0 0.0
  %322 = vmatpush1.msra.mxu0 %v104
  %323 = vmatprep.subr.mxu0 0.0
  %324 = vmatpush1.msra.mxu0 %v105
  %325 = vmatprep.subr.mxu0 0.0
  %326 = vmatpush1.msra.mxu0 %v106
  %327 = vmatprep.subr.mxu0 0.0
  %328 = vmatpush1.msra.mxu0 %v107
  %329 = vmatprep.subr.mxu0 0.0
  %330 = vmatpush1.msra.mxu0 %v108
  %331 = vmatprep.subr.mxu0 0.0
  %332 = vmatpush1.msra.mxu0 %v109
  %333 = vmatprep.subr.mxu0 0.0
  %334 = vmatpush1.msra.mxu0 %v110
  %335 = vmatprep.subr.mxu0 0.0
  %336 = vmatpush1.msra.mxu0 %v111
  %337 = vmatprep.subr.mxu0 0.0
  %338 = vmatpush1.msra.mxu0 %v112
  %339 = vmatprep.subr.mxu0 0.0
  %340 = vmatpush1.msra.mxu0 %v113
  %341 = vmatprep.subr.mxu0 0.0
  %342 = vmatpush1.msra.mxu0 %v114
  %343 = vmatprep.subr.mxu0 0.0
  %344 = vmatpush1.msra.mxu0 %v115
  %345 = vmatprep.subr.mxu0 0.0
  %346 = vmatpush1.msra.mxu0 %v116
  %347 = vmatprep.subr.mxu0 0.0
  %348 = vmatpush1.msra.mxu0 %v117
  %349 = vmatprep.subr.mxu0 0.0
  %350 = vmatpush1.msra.mxu0 %v118
  %351 = vmatprep.subr.mxu0 0.0
  %352 = vmatpush1.msra.mxu0 %v119
  %353 = vmatprep.subr.mxu0 0.0
  %354 = vmatpush1.msra.mxu0 %v120
  %355 = vmatprep.subr.mxu0 0.0
  %356 = vmatpush1.msra.mxu0 %v121
  %357 = vmatprep.subr.mxu0 0.0
  %358 = vmatpush1.msra.mxu0 %v122
  %359 = vmatprep.subr.mxu0 0.0
  %360 = vmatpush1.msra.mxu0 %v123
  %361 = vmatprep.mubr.f32.mxu0 %v25
  %362 = vmatmul.mubr.f32.gmra.mrb[0].mxu0 %v24
  %v363 = vpop.f32.mrb[0].mxu0
  %v364 = vadd.f32 %v294, %v363
  %v365 = vpop.f32.mrb[0].mxu0
  %366 = vdwg.mxu0
  %367 = vmatprep.subr.mxu0 0.0
  %368 = vmatpush1.msra.mxu0 %v124
  %369 = vmatprep.subr.mxu0 0.0
  %370 = vmatpush1.msra.mxu0 %v125
  %371 = vmatprep.subr.mxu0 0.0
  %372 = vmatpush1.msra.mxu0 %v126
  %373 = vmatprep.subr.mxu0 0.0
  %374 = vmatpush1.msra.mxu0 %v127
  %375 = vmatprep.subr.mxu0 0.0
  %376 = vmatpush1.msra.mxu0 %v128
  %377 = vmatprep.subr.mxu0 0.0
  %378 = vmatpush1.msra.mxu0 %v129
  %379 = vmatprep.subr.mxu0 0.0
  %380 = vmatpush1.msra.mxu0 %v130
  %381 = vmatprep.subr.mxu0 0.0
  %382 = vmatpush1.msra.mxu0 %v131
  %383 = vmatprep.subr.mxu0 0.0
  %384 = vmatpush1.msra.mxu0 %v132
  %385 = vmatprep.subr.mxu0 0.0
  %386 = vmatpush1.msra.mxu0 %v133
  %387 = vmatprep.subr.mxu0 0.0
  %388 = vmatpush1.msra.mxu0 %v134
  %389 = vmatprep.subr.mxu0 0.0
  %390 = vmatpush1.msra.mxu0 %v135
  %391 = vmatprep.subr.mxu0 0.0
  %392 = vmatpush1.msra.mxu0 %v136
  %393 = vmatprep.subr.mxu0 0.0
  %394 = vmatpush1.msra.mxu0 %v137
  %395 = vmatprep.subr.mxu0 0.0
  %396 = vmatpush1.msra.mxu0 %v138
  %397 = vmatprep.subr.mxu0 0.0
  %398 = vmatpush1.msra.mxu0 %v139
  %399 = vmatprep.subr.mxu0 0.0
  %400 = vmatpush1.msra.mxu0 %v140
  %401 = vmatprep.subr.mxu0 0.0
  %402 = vmatpush1.msra.mxu0 %v141
  %403 = vmatprep.subr.mxu0 0.0
  %404 = vmatpush1.msra.mxu0 %v142
  %405 = vmatprep.subr.mxu0 0.0
  %406 = vmatpush1.msra.mxu0 %v143
  %407 = vmatprep.subr.mxu0 0.0
  %408 = vmatpush1.msra.mxu0 %v144
  %409 = vmatprep.subr.mxu0 0.0
  %410 = vmatpush1.msra.mxu0 %v145
  %411 = vmatprep.subr.mxu0 0.0
  %412 = vmatpush1.msra.mxu0 %v146
  %413 = vmatprep.subr.mxu0 0.0
  %414 = vmatpush1.msra.mxu0 %v147
  %415 = vmatprep.subr.mxu0 0.0
  %416 = vmatpush1.msra.mxu0 %v148
  %417 = vmatprep.subr.mxu0 0.0
  %418 = vmatpush1.msra.mxu0 %v149
  %419 = vmatprep.subr.mxu0 0.0
  %420 = vmatpush1.msra.mxu0 %v150
  %421 = vmatprep.subr.mxu0 0.0
  %422 = vmatpush1.msra.mxu0 %v151
  %423 = vmatprep.subr.mxu0 0.0
  %424 = vmatpush1.msra.mxu0 %v152
  %425 = vmatprep.subr.mxu0 0.0
  %426 = vmatpush1.msra.mxu0 %v153
  %427 = vmatprep.subr.mxu0 0.0
  %428 = vmatpush1.msra.mxu0 %v154
  %429 = vmatprep.subr.mxu0 0.0
  %430 = vmatpush1.msra.mxu0 %v155
  %431 = vmatprep.mubr.f32.mxu0 %v27
  %432 = vmatmul.mubr.f32.gmra.mrb[0].mxu0 %v26
  %v433 = vpop.f32.mrb[0].mxu0
  %v434 = vadd.f32 %v364, %v433
  %v435 = vpop.f32.mrb[0].mxu0
  %436 = vdwg.mxu0
  %v437 = vmax.f32 %v434, 0.0
  %v438 = vld [vmem:[%s3] sm:$0xff]
  %v439 = vld [vmem:[%s3 + $0x8] sm:$0xff]
  %v440 = vld [vmem:[%s3 + $0x10] sm:$0xff]
  %v441 = vld [vmem:[%s3 + $0x18] sm:$0xff]
  %v442 = vld [vmem:[%s4] sm:$0x1]
  %v444 = vlaneseq
  %v445 = vshrl.u32 %v444, 7
  %v446 = vsub.s32 0, %v445
  %v447 = vrot.slane %v442, %v446
  %vm449 = vcmask 261120
  %v451 = vsel %vm449, %v437, 0
  %453 = vmatprep.subr.mxu0 0.0
  %454 = vmatpush1.msra.mxu0 %v438
  %455 = vmatprep.subr.mxu0 0.0
  %456 = vmatpush1.msra.mxu0 %v439
  %457 = vmatprep.subr.mxu0 0.0
  %458 = vmatpush1.msra.mxu0 %v440
  %459 = vmatprep.subr.mxu0 0.0
  %460 = vmatpush1.msra.mxu0 %v441
  %461 = vmatprep.subr.mxu0 0.0
  %462 = vmatpush1.msra.mxu0 0.0
  %463 = vmatprep.subr.mxu0 0.0
  %464 = vmatpush1.msra.mxu0 0.0
  %465 = vmatprep.subr.mxu0 0.0
  %466 = vmatpush1.msra.mxu0 0.0
  %467 = vmatprep.subr.mxu0 0.0
  %468 = vmatpush1.msra.mxu0 0.0
  %469 = vmatprep.subr.mxu0 0.0
  %470 = vmatpush1.msra.mxu0 0.0
  %471 = vmatprep.subr.mxu0 0.0
  %472 = vmatpush1.msra.mxu0 0.0
  %473 = vmatprep.subr.mxu0 0.0
  %474 = vmatpush1.msra.mxu0 0.0
  %475 = vmatprep.subr.mxu0 0.0
  %476 = vmatpush1.msra.mxu0 0.0
  %477 = vmatprep.subr.mxu0 0.0
  %478 = vmatpush1.msra.mxu0 0.0
  %479 = vmatprep.subr.mxu0 0.0
  %480 = vmatpush1.msra.mxu0 0.0
  %481 = vmatprep.subr.mxu0 0.0
  %482 = vmatpush1.msra.mxu0 0.0
  %483 = vmatprep.subr.mxu0 0.0
  %484 = vmatpush1.msra.mxu0 0.0
  %485 = vmatprep.subr.mxu0 0.0
  %486 = vmatpush1.msra.mxu0 0.0
  %487 = vmatprep.subr.mxu0 0.0
  %488 = vmatpush1.msra.mxu0 0.0
  %489 = vmatprep.subr.mxu0 0.0
  %490 = vmatpush1.msra.mxu0 0.0
  %491 = vmatprep.subr.mxu0 0.0
  %492 = vmatpush1.msra.mxu0 0.0
  %493 = vmatprep.subr.mxu0 0.0
  %494 = vmatpush1.msra.mxu0 0.0
  %495 = vmatprep.subr.mxu0 0.0
  %496 = vmatpush1.msra.mxu0 0.0
  %497 = vmatprep.subr.mxu0 0.0
  %498 = vmatpush1.msra.mxu0 0.0
  %499 = vmatprep.subr.mxu0 0.0
  %500 = vmatpush1.msra.mxu0 0.0
  %501 = vmatprep.subr.mxu0 0.0
  %502 = vmatpush1.msra.mxu0 0.0
  %503 = vmatprep.subr.mxu0 0.0
  %504 = vmatpush1.msra.mxu0 0.0
  %505 = vmatprep.subr.mxu0 0.0
  %506 = vmatpush1.msra.mxu0 0.0
  %507 = vmatprep.subr.mxu0 0.0
  %508 = vmatpush1.msra.mxu0 0.0
  %509 = vmatprep.subr.mxu0 0.0
  %510 = vmatpush1.msra.mxu0 0.0
  %511 = vmatprep.subr.mxu0 0.0
  %512 = vmatpush1.msra.mxu0 0.0
  %513 = vmatprep.subr.mxu0 0.0
  %514 = vmatpush1.msra.mxu0 0.0
  %515 = vmatprep.subr.mxu0 0.0
  %516 = vmatpush1.msra.mxu0 0.0
  %517 = vmatprep.mubr.f32.mxu0 0.0
  %518 = vmatmul.mubr.f32.gmra.mrb[0].mxu0 %v451
  %v519 = vpop.f32.mrb[0].mxu0
  %v520 = vadd.f32 %v447, %v519
  %v521 = vpop.f32.mrb[0].mxu0
  %522 = vdwg.mxu0
  %v523 = vmax.f32 %v520, 0.0
  %vm524 = vcmask 130048
  %525 = vst.msk [vmem:[%s5] sm:$0xff] %vm524, %v523
  // Predicated region
  $region22: #{_nmnet_forward.1} parent=0 // pred_check
    _
  $region23: #{_nmnet_forward.1} parent=0 // pred_check_branch
    %527 = sbr.rel (0) target = $region25
  $region24: #{_nmnet_forward.1} parent=0 // pred_region
    _
  $region25: #{_nmnet_forward.1} parent=0 // pred_fallthru
    _
  // Predicated region
  $region26: #{_nmnet_forward.1} parent=0 // pred_check
    _
  $region27: #{_nmnet_forward.1} parent=0 // pred_check_branch
    %529 = sbr.rel (0) target = $region29
  $region28: #{_nmnet_forward.1} parent=0 // pred_region
    _
  $region29: #{_nmnet_forward.1} parent=0 // pred_fallthru
    _

</llo_original>
